<compile_context>
chip_gen: v7x
topology: tpu7x:2x2x1
jax: 0.10.0
libtpu: 0.0.40
codegen_flags: <defaults>
</compile_context>

<pallas_src>
import functools
import math

import jax
import jax.numpy as jnp
from jax import lax
from jax.experimental import pallas as pl
from jax.experimental.pallas import tpu as pltpu

_MB = 1024 * 1024
_DN = (((1,), (1,)), ((), ()))  # contract dim 1 of LHS with dim 1 of RHS (x @ W^T)


def _round_up(x: int, m: int) -> int:
    return (x + m - 1) // m * m


def _keep_mask(shape, seed_i32, row_off, col_off, dropout_p: float):
    """Stateless dropout keep-mask from a splitmix32-style hash.

    Pure vector integer ops -> lowers on Mosaic *and* in interpret mode, and
    the decision for a given (seed, global row, global col) is independent of
    the tiling, so resident and weight-tiled paths produce identical masks.
    """
    r = lax.broadcasted_iota(jnp.int32, shape, 0) + row_off
    c = lax.broadcasted_iota(jnp.int32, shape, 1) + col_off
    v = (r.astype(jnp.uint32) * jnp.uint32(0x9E3779B9)) \
        ^ (c.astype(jnp.uint32) * jnp.uint32(0x85EBCA6B)) \
        ^ seed_i32.astype(jnp.uint32)
    v = (v ^ (v >> 16)) * jnp.uint32(0x7FEB352D)
    v = (v ^ (v >> 15)) * jnp.uint32(0x846CA68B)
    v = v ^ (v >> 16)
    thresh = min(max(int(round(dropout_p * float(1 << 31))), 0), (1 << 31) - 1)
    # Top 31 bits as a non-negative int32 -> signed compare is safe everywhere.
    return (v >> 1).astype(jnp.int32) >= jnp.int32(thresh)


def _apply_dropout(h, seed_ref, row_off, col_off, dropout_p: float):
    keep = _keep_mask(h.shape, seed_ref[0], row_off, col_off, dropout_p)
    scale = jnp.float32(1.0 / (1.0 - dropout_p))
    return jnp.where(keep, h * scale, jnp.float32(0.0))


# --------------------------------------------------------------------------- #
# Kernel 1: weight fully resident in VMEM (single copy, fetched once).
# Grid: (row tiles,)  -- "parallel".
# --------------------------------------------------------------------------- #
def _ffn_kernel_resident(seed_ref, x_ref, w_ref, b_ref, o_ref, *,
                         dropout_p: float, training: bool):
    x = x_ref[...]                              # (tm, d_model), native dtype
    w = w_ref[...]                              # (d_ff, d_model), native dtype
    b = b_ref[...].astype(jnp.float32)          # (1, d_ff)

    # linear_1 + ReLU (MXU matmul on native-dtype operands, f32 accumulate).
    h = lax.dot_general(x, w, _DN, preferred_element_type=jnp.float32) + b
    h = jnp.maximum(h, 0.0)

    if training and dropout_p > 0.0:
        h = _apply_dropout(h, seed_ref, pl.program_id(0) * h.shape[0], 0,
                           dropout_p)

    # Second application of the SAME linear_1 (module overwrites linear_1).
    # Cast h back to the weight dtype so bf16 weights stay on the bf16 MXU path
    # (no-op for f32).
    y = lax.dot_general(h.astype(w.dtype), w, _DN,
                        preferred_element_type=jnp.float32) + b
    o_ref[...] = y.astype(o_ref.dtype)


# --------------------------------------------------------------------------- #
# Kernel 2: weight streamed over a second grid axis (for d_model too large to
# keep the full (d, d) weight in VMEM, e.g. on v7x's 64 MiB).
# Grid: (row tiles, d_ff tiles)  -- ("parallel", "arbitrary").
# --------------------------------------------------------------------------- #
def _ffn_kernel_tiled(seed_ref, x_ref, wr_ref, wc_ref, bh_ref, by_ref,
                      o_ref, acc_ref, *, dropout_p: float, training: bool):
    j = pl.program_id(1)

    @pl.when(j == 0)
    def _():
        acc_ref[...] = jnp.zeros_like(acc_ref)

    x = x_ref[...]                              # (tm, d_model)
    wr = wr_ref[...]                            # (tj, d_model): rows j-block of W
    h = lax.dot_general(x, wr, _DN, preferred_element_type=jnp.float32)
    h = h + bh_ref[...].astype(jnp.float32)     # (1, tj) bias slice
    h = jnp.maximum(h, 0.0)

    if training and dropout_p > 0.0:
        h = _apply_dropout(h, seed_ref,
                           pl.program_id(0) * h.shape[0],
                           j * h.shape[1], dropout_p)

    wc = wc_ref[...]                            # (d_ff, tj): cols j-block of W
    acc_ref[...] += lax.dot_general(h.astype(wc.dtype), wc, _DN,
                                    preferred_element_type=jnp.float32)

    @pl.when(j == pl.num_programs(1) - 1)
    def _():
        o_ref[...] = (acc_ref[...]
                      + by_ref[...].astype(jnp.float32)).astype(o_ref.dtype)


# --------------------------------------------------------------------------- #
# Tiling heuristics
# --------------------------------------------------------------------------- #
def _vmem_budget_bytes() -> int:
    """Generation-aware scoped-VMEM budget: physical minus headroom for Mosaic
    internals (v7x: 64 MiB -> ~48 MiB; v5e/v6e: 128 MiB -> ~100 MiB)."""
    try:
        phys = int(pltpu.get_tpu_info().vmem_capacity_bytes)
    except Exception:
        phys = 64 * _MB                         # conservative: v7x-sized VMEM
    return max(32 * _MB, min(phys - 16 * _MB, 100 * _MB))


def _largest_aligned_divisor(d: int, tj_max: int):
    """Largest multiple of 128 that divides d and is <= tj_max (None if none)."""
    best = None
    t = 128
    limit = min(d, max(tj_max, 128))
    while t <= limit:
        if d % t == 0:
            best = t
        t += 128
    return best


def _choose_tiles(rows: int, d: int, itemsize: int, cap: int, tj_override=None):
    """Pick (row_tile tm, d_ff tile tj, weight_resident)."""
    w_bytes = d * d * itemsize

    if tj_override is not None:
        tj = min(int(tj_override), d)
        resident = tj >= d
    elif w_bytes <= int(0.55 * cap):
        tj, resident = d, True                  # whole weight stays in VMEM
    else:
        # Stream the weight over a second ("arbitrary") grid axis.
        tj_max = max(128, int(0.5 * cap) // (4 * d * itemsize))
        tj = _largest_aligned_divisor(d, tj_max)
        if tj is None:
            # TODO(synk): pad d_model/d_ff to a multiple of 128 (or 256 for the
            # v6e/v7x MXU) so the weight can be streamed; resident fallback.
            tj, resident = d, True
        else:
            resident = False

    if resident:
        fixed = w_bytes + 4 * d * itemsize
        per_row = 4 * d * itemsize + 6 * d * 4          # x/out dbl-buf + f32 temps
    else:
        fixed = 4 * tj * d * itemsize + 4 * (tj + d) * itemsize
        per_row = 4 * d * itemsize + d * 4 + 5 * tj * 4  # + acc + h temps

    avail = max(cap - fixed - 2 * _MB, 2 * _MB)
    tm = int(max(8, min(avail // per_row, 2048)))
    tm = (tm // 256) * 256 if tm >= 256 else max(8, (tm // 8) * 8)

    # Keep >= 8 row tiles when there is enough work so both v7x TensorCores get
    # rows on the "parallel" axis (harmless on single-TC v5e/v6e).
    while tm > 256 and (rows + tm - 1) // tm < 8 and rows >= 8 * 256:
        tm = max(256, _round_up(tm // 2, 256))

    if tm >= rows:
        tm = rows                                # full-dim block is always legal
    return tm, tj, resident


# --------------------------------------------------------------------------- #
# Public wrapper
# --------------------------------------------------------------------------- #
def feed_forward_block(x, w, b, *, dropout_p: float = 0.0, training: bool = False,
                       seed: int = 0, tm=None, tj=None):
    """Pallas TPU forward for FeedForwardBlock: linear_1(dropout(relu(linear_1(x))))."""
    orig_shape = x.shape
    d_model = orig_shape[-1]
    w = jnp.asarray(w)
    b = jnp.asarray(b)
    d_ff, d_in = w.shape
    if d_in != d_model:
        raise ValueError(f"weight in-dim {d_in} != x hidden dim {d_model}")
    if d_ff != d_model:
        raise ValueError("FeedForwardBlock.forward applies the same linear_1 "
                         "twice, which requires d_ff == d_model")

    rows = math.prod(orig_shape[:-1])
    x2 = x.reshape(rows, d_model)
    w2 = w.astype(x2.dtype)                     # (d_ff, d_model) -- NO transpose
    b2 = b.reshape(1, d_ff).astype(x2.dtype)
    seed_arr = jnp.asarray([seed], dtype=jnp.int32)

    itemsize = jnp.dtype(x2.dtype).itemsize
    cap = _vmem_budget_bytes()
    tm_sel, tj_sel, resident = _choose_tiles(rows, d_model, itemsize, cap,
                                             tj_override=tj)
    if tm is not None:
        tm_sel = int(tm)
    if not resident and d_ff % tj_sel != 0:
        raise ValueError(f"d_ff tile {tj_sel} must divide d_ff {d_ff}")
    vmem_limit = int(cap)

    # TODO(synk): (training, low prio) split the row tile into 2-4 sub-tiles via
    # an unrolled fori_loop so the next sub-tile's MXU push overlaps dropout VPU work.
    kernel_kwargs = dict(dropout_p=float(dropout_p), training=bool(training))
    out_shape = jax.ShapeDtypeStruct((rows, d_model), x.dtype)
    cparams_1d = pltpu.CompilerParams(dimension_semantics=("parallel",),
                                      vmem_limit_bytes=vmem_limit)
    cparams_2d = pltpu.CompilerParams(dimension_semantics=("parallel", "arbitrary"),
                                      vmem_limit_bytes=vmem_limit)

    if resident:
        # Whole weight / bias as un-pipelined VMEM inputs: exactly one copy,
        # fetched once (no double buffering of the constant block).
        out = pl.pallas_call(
            functools.partial(_ffn_kernel_resident, **kernel_kwargs),
            out_shape=out_shape,
            grid_spec=pltpu.PrefetchScalarGridSpec(
                num_scalar_prefetch=0,
                grid=(pl.cdiv(rows, tm_sel),),
                in_specs=[
                    pl.BlockSpec(memory_space=pltpu.MemorySpace.SMEM),   # seed (1,)
                    pl.BlockSpec((tm_sel, d_model), lambda i: (i, 0)),   # x rows
                    pl.BlockSpec(memory_space=pltpu.MemorySpace.VMEM),   # W (resident)
                    pl.BlockSpec(memory_space=pltpu.MemorySpace.VMEM),   # bias
                ],
                out_specs=pl.BlockSpec((tm_sel, d_model), lambda i: (i, 0)),
            ),
            compiler_params=cparams_1d,
        )(seed_arr, x2, w2, b2)
    else:
        # Weight streamed in (tj, d) row blocks / (d, tj) column blocks over an
        # "arbitrary" reduction axis; y accumulated in an f32 VMEM scratch.
        out = pl.pallas_call(
            functools.partial(_ffn_kernel_tiled, **kernel_kwargs),
            out_shape=out_shape,
            grid_spec=pltpu.PrefetchScalarGridSpec(
                num_scalar_prefetch=0,
                grid=(pl.cdiv(rows, tm_sel), d_ff // tj_sel),
                in_specs=[
                    pl.BlockSpec(memory_space=pltpu.MemorySpace.SMEM),       # seed
                    pl.BlockSpec((tm_sel, d_model), lambda i, j: (i, 0)),    # x rows
                    pl.BlockSpec((tj_sel, d_model), lambda i, j: (j, 0)),    # W rows
                    pl.BlockSpec((d_ff, tj_sel), lambda i, j: (0, j)),       # W cols
                    pl.BlockSpec((1, tj_sel), lambda i, j: (0, j)),          # bias slice
                    pl.BlockSpec(memory_space=pltpu.MemorySpace.VMEM),       # full bias
                ],
                out_specs=pl.BlockSpec((tm_sel, d_model), lambda i, j: (i, 0)),
                scratch_shapes=[pltpu.VMEM((tm_sel, d_model), jnp.float32)],
            ),
            compiler_params=cparams_2d,
        )(seed_arr, x2, w2, w2, b2, b2)

    return out.reshape(orig_shape)


def _reference(x, w, b):
    h = jnp.maximum(x @ w.T + b, 0.0)
    return h @ w.T + b


if __name__ == "__main__":
    key = jax.random.PRNGKey(0)
    kx, kw, kb, kx2, kw2, kb2, kx3 = jax.random.split(key, 7)

    # d_ff == d_model because the module applies the same linear_1 twice.
    batch, seq, d_model = 2, 8, 128
    d_ff = d_model
    bound = 1.0 / math.sqrt(d_model)

    x = jax.random.normal(kx, (batch, seq, d_model), dtype=jnp.float32)
    w = jax.random.uniform(kw, (d_ff, d_model), dtype=jnp.float32,
                           minval=-bound, maxval=bound)
    b = jax.random.uniform(kb, (d_ff,), dtype=jnp.float32,
                           minval=-bound, maxval=bound)

    # 1) Inference (dropout == identity), resident-weight path.
    y = feed_forward_block(x, w, b, dropout_p=0.1, training=False)
    jax.block_until_ready(y)
    y_ref = _reference(x, w, b)
    assert y.shape == x.shape
    assert jnp.allclose(y, y_ref, atol=2e-2, rtol=2e-2), \
        float(jnp.max(jnp.abs(y - y_ref)))

    # 2) Non-divisible row count: cdiv grid + masked tail block.
    x_odd = jax.random.normal(kx2, (3, 5, d_model), dtype=jnp.float32)
    y_odd = feed_forward_block(x_odd, w, b, dropout_p=0.1, training=False)
    jax.block_until_ready(y_odd)
    assert jnp.allclose(y_odd, _reference(x_odd, w, b), atol=2e-2, rtol=2e-2)

    # 3) Forced weight-tiled path (2 d_ff blocks, f32 accumulator scratch).
    d2 = 256
    bound2 = 1.0 / math.sqrt(d2)
    x_t = jax.random.normal(kx3, (2, 8, d2), dtype=jnp.float32)
    w_t = jax.random.uniform(kw2, (d2, d2), dtype=jnp.float32,
                             minval=-bound2, maxval=bound2)
    b_t = jax.random.uniform(kb2, (d2,), dtype=jnp.float32,
                             minval=-bound2, maxval=bound2)
    y_t = feed_forward_block(x_t, w_t, b_t, dropout_p=0.1, training=False, tj=128)
    jax.block_until_ready(y_t)
    assert jnp.allclose(y_t, _reference(x_t, w_t, b_t), atol=2e-2, rtol=2e-2)

    # 4) Training path (stateless hash dropout): deterministic and finite.
    y_tr1 = feed_forward_block(x, w, b, dropout_p=0.5, training=True, seed=1234)
    y_tr2 = feed_forward_block(x, w, b, dropout_p=0.5, training=True, seed=1234)
    jax.block_until_ready((y_tr1, y_tr2))
    assert y_tr1.shape == x.shape
    assert bool(jnp.all(jnp.isfinite(y_tr1)))
    assert bool(jnp.all(y_tr1 == y_tr2))

    # 5) bf16 inference: native bf16 MXU path (loose mixed-precision tolerance).
    xb, wb, bb = (x.astype(jnp.bfloat16), w.astype(jnp.bfloat16),
                  b.astype(jnp.bfloat16))
    y_bf = feed_forward_block(xb, wb, bb, dropout_p=0.1, training=False)
    jax.block_until_ready(y_bf)
    ref_bf = _reference(xb.astype(jnp.float32), wb.astype(jnp.float32),
                        bb.astype(jnp.float32))
    assert jnp.allclose(y_bf.astype(jnp.float32), ref_bf, atol=2e-1, rtol=2e-1)

    print("KERNEL_OK")
</pallas_src>

<mosaic_0001>
module attributes {stable_mosaic.version = 11 : i64} {
  func.func @_ffn_kernel_resident(%arg0: i32, %arg1: memref<1xi32, #tpu.memory_space<smem>>, %arg2: memref<16x128xf32, #tpu.memory_space<vmem>>, %arg3: memref<128x128xf32, #tpu.memory_space<vmem>>, %arg4: memref<1x128xf32, #tpu.memory_space<vmem>>, %arg5: memref<16x128xf32, #tpu.memory_space<vmem>>) attributes {dimension_semantics = [#tpu.dimension_semantics<parallel>], iteration_bounds = array<i64: 1>, scalar_prefetch = 0 : i64, scratch_operands = 0 : i64, tpu.core_type = #tpu.core_type<tc>, window_params = [{transform_indices = @transform_0, window_bounds = array<i64: 1>}, {transform_indices = @transform_1, window_bounds = array<i64: 16, 128>}, {pipeline_mode = #tpu.pipeline_mode<synchronous>, transform_indices = @transform_2, window_bounds = array<i64: 128, 128>}, {pipeline_mode = #tpu.pipeline_mode<synchronous>, transform_indices = @transform_3, window_bounds = array<i64: 1, 128>}, {transform_indices = @transform_4, window_bounds = array<i64: 16, 128>}]} {
    %c0 = arith.constant 0 : index
    %c0_0 = arith.constant 0 : index
    %0 = vector.load %arg2[%c0, %c0_0] : memref<16x128xf32, #tpu.memory_space<vmem>>, vector<16x128xf32>
    %c0_1 = arith.constant 0 : index
    %c0_2 = arith.constant 0 : index
    %1 = vector.load %arg3[%c0_1, %c0_2] : memref<128x128xf32, #tpu.memory_space<vmem>>, vector<128x128xf32>
    %c0_3 = arith.constant 0 : index
    %c0_4 = arith.constant 0 : index
    %2 = vector.load %arg4[%c0_3, %c0_4] : memref<1x128xf32, #tpu.memory_space<vmem>>, vector<1x128xf32>
    %cst = arith.constant dense<0.000000e+00> : vector<16x128xf32>
    %3 = tpu.matmul %0, %1, %cst {dimension_numbers = #tpu.dot_dimension_numbers<[1], [1], [0], [0], [0, 0, 1, 0], [], []>} : vector<16x128xf32>, vector<128x128xf32>, vector<16x128xf32> -> vector<16x128xf32>
    %4 = vector.broadcast %2 : vector<1x128xf32> to vector<16x128xf32>
    %5 = arith.addf %3, %4 : vector<16x128xf32>
    %cst_5 = arith.constant 0.000000e+00 : f32
    %6 = vector.broadcast %cst_5 : f32 to vector<16x128xf32>
    %7 = arith.maximumf %5, %6 : vector<16x128xf32>
    %cst_6 = arith.constant dense<0.000000e+00> : vector<16x128xf32>
    %8 = tpu.matmul %7, %1, %cst_6 {dimension_numbers = #tpu.dot_dimension_numbers<[1], [1], [0], [0], [0, 0, 1, 0], [], []>} : vector<16x128xf32>, vector<128x128xf32>, vector<16x128xf32> -> vector<16x128xf32>
    %9 = vector.broadcast %2 : vector<1x128xf32> to vector<16x128xf32>
    %10 = arith.addf %8, %9 : vector<16x128xf32>
    %c0_7 = arith.constant 0 : index
    %c0_8 = arith.constant 0 : index
    %11 = vector.load %arg5[%c0_7, %c0_8] : memref<16x128xf32, #tpu.memory_space<vmem>>, vector<16x128xf32>
    tpu.vector_store %arg5[%c0_7, %c0_8], %10 {strides = array<i32>} : memref<16x128xf32, #tpu.memory_space<vmem>>, vector<16x128xf32>,
    return
  }
  func.func @transform_0(%arg0: i32) -> i32 {
    %c0_i32 = arith.constant 0 : i32
    %c0_i32_0 = arith.constant 0 : i32
    return %c0_i32 : i32
  }
  func.func @transform_1(%arg0: i32) -> (i32, i32) {
    %c0_i32 = arith.constant 0 : i32
    %c0_i32_0 = arith.constant 0 : i32
    return %arg0, %c0_i32 : i32, i32
  }
  func.func @transform_2(%arg0: i32) -> (i32, i32) {
    %c0_i32 = arith.constant 0 : i32
    %c0_i32_0 = arith.constant 0 : i32
    %c0_i32_1 = arith.constant 0 : i32
    return %c0_i32, %c0_i32_0 : i32, i32
  }
  func.func @transform_3(%arg0: i32) -> (i32, i32) {
    %c0_i32 = arith.constant 0 : i32
    %c0_i32_0 = arith.constant 0 : i32
    %c0_i32_1 = arith.constant 0 : i32
    return %c0_i32, %c0_i32_0 : i32, i32
  }
  func.func @transform_4(%arg0: i32) -> (i32, i32) {
    %c0_i32 = arith.constant 0 : i32
    %c0_i32_0 = arith.constant 0 : i32
    return %arg0, %c0_i32 : i32, i32
  }
}

</mosaic_0001>

<llo_original>
// kernel: tpu_custom_call.1
$region0: #{tpu_custom_call.1}
  #allocation0 [shape = 'u32[]', space=smem, size = 0x4, offset = 0x4, fixed_abs, tag = 'smem constant byte address 0x4 - core index']
  #allocation1 [shape = 'u32[144,128]{1,0:T(1,128)}', space=vmem, size = 0x12000, scoped, tag = 'internal scratch']
  #allocation2 [shape = 's32[1]{0:T(128)S(6)}', space=smem, size = 0x200, scoped, tag = 'scoped memory for tpu_custom_call.1']
  %s0 = inlined_call_operand.<no memory space> [shape: s32[1], index: 0, kind: input, shape index: {}]
  %s1 = inlined_call_operand.hbm [shape: f32[16,128], index: 1, kind: input, shape index: {}]
  %s2 = inlined_call_operand.hbm [shape: f32[128,128], index: 2, kind: input, shape index: {}]
  %s3 = inlined_call_operand.vmem [shape: f32[1,128], index: 3, kind: input, shape index: {}]
  %s4 = inlined_call_operand.hbm [shape: f32[16,128], index: 4, kind: output, shape index: {}]
  %s5 = sld [smem:[#allocation0]]
  $region34: #{tpu_custom_call.1} parent=0
    _
  %s7 = ssub.s32 1, %s5
  %s8 = scalar_select 0, %s7, %s5
  %9 = sst [smem:[#allocation2]] %s0
  $region1: #{tpu_custom_call.1} parent=0
    #allocation3 [shape = 'u8[8192]{0}', space=vmem, size = 0x2000, scoped, tag = 'input window, operand 1, single buffered']
    #allocation4 [shape = 's32[1]{0}', space=sflag, size = 0x4, scoped, tag = 'scoped memory for tpu_custom_call.1']
    #allocation5 [shape = 's32[1]{0}', space=sflag, size = 0x4, scoped, tag = 'scoped memory for tpu_custom_call.1']
    #allocation6 [shape = 'u8[65536]{0}', space=vmem, size = 0x10000, scoped, tag = 'input window, operand 2, single buffered']
    #allocation7 [shape = 's32[1]{0}', space=sflag, size = 0x4, scoped, tag = 'scoped memory for tpu_custom_call.1']
    #allocation8 [shape = 'u8[8192]{0}', space=vmem, size = 0x2000, scoped, tag = 'output window, operand 0, single buffered']
    %10 = vsyncpa [#allocation4], 0
    %11 = vsyncpa [#allocation7], 0
    %12 = vsyncpa [#allocation5], 0
    // Predicated region
    $region2: #{tpu_custom_call.1} parent=1 // pred_check
      _
    $region3: #{tpu_custom_call.1} parent=1 // pred_check_branch
      %14 = sbr.rel (0) target = $region5
    $region4: #{tpu_custom_call.1} parent=1 // pred_region
      _
    $region5: #{tpu_custom_call.1} parent=1 // pred_fallthru
      _
    // Predicated region
    $region6: #{tpu_custom_call.1} parent=1 // pred_check
      _
    $region7: #{tpu_custom_call.1} parent=1 // pred_check_branch
      %16 = sbr.rel (0) target = $region9
    $region8: #{tpu_custom_call.1} parent=1 // pred_region
      %s18 = ssub.s32 256, 256
      %19 = vsyncadd [#allocation4], %s18
      %s20 = sshll.u32 [#allocation3], 4
      %s21 = int_to_ptr.vmem [resolvable:$true] %s20
      %26 = dma.hbm_to_vmem [thread:$0]  %s1, 256, %s21, [#allocation4], 128, 128, 8
    $region9: #{tpu_custom_call.1} parent=1 // pred_fallthru
      _
    // Predicated region
    $region10: #{tpu_custom_call.1} parent=1 // pred_check
      _
    $region11: #{tpu_custom_call.1} parent=1 // pred_check_branch
      %28 = sbr.rel (0) target = $region13
    $region12: #{tpu_custom_call.1} parent=1 // pred_region
      %s30 = ssub.s32 2048, 2048
      %31 = vsyncadd [#allocation7], %s30
      %s32 = sshll.u32 [#allocation6], 4
      %s33 = int_to_ptr.vmem [resolvable:$true] %s32
      %38 = dma.hbm_to_vmem [thread:$0]  %s2, 2048, %s33, [#allocation7], 128, 128, 8
    $region13: #{tpu_custom_call.1} parent=1 // pred_fallthru
      _
    // Predicated region
    $region14: #{tpu_custom_call.1} parent=1 // pred_check
      _
    $region15: #{tpu_custom_call.1} parent=1 // pred_check_branch
      %40 = sbr.rel (0) target = $region17
    $region16: #{tpu_custom_call.1} parent=1 // pred_region
      _
    $region17: #{tpu_custom_call.1} parent=1 // pred_fallthru
      _
    // Predicated region
    $region18: #{tpu_custom_call.1} parent=1 // pred_check
      _
    $region19: #{tpu_custom_call.1} parent=1 // pred_check_branch
      %42 = sbr.rel (0) target = $region21
    $region20: #{tpu_custom_call.1} parent=1 // pred_region
      %43 = dma.done [#allocation4], 256
    $region21: #{tpu_custom_call.1} parent=1 // pred_fallthru
      _
    // Predicated region
    $region22: #{tpu_custom_call.1} parent=1 // pred_check
      _
    $region23: #{tpu_custom_call.1} parent=1 // pred_check_branch
      %45 = sbr.rel (0) target = $region25
    $region24: #{tpu_custom_call.1} parent=1 // pred_region
      %46 = dma.done [#allocation7], 2048
    $region25: #{tpu_custom_call.1} parent=1 // pred_fallthru
      _
    %v47 = vld [vmem:[#allocation3] sm:$0xff]
    %v48 = vld [vmem:[#allocation3 + $0x8] sm:$0xff]
    %v49 = vld [vmem:[#allocation6] sm:$0xff]
    %v50 = vld [vmem:[#allocation6 + $0x8] sm:$0xff]
    %v51 = vld [vmem:[#allocation6 + $0x10] sm:$0xff]
    %v52 = vld [vmem:[#allocation6 + $0x18] sm:$0xff]
    %v53 = vld [vmem:[#allocation6 + $0x20] sm:$0xff]
    %v54 = vld [vmem:[#allocation6 + $0x28] sm:$0xff]
    %v55 = vld [vmem:[#allocation6 + $0x30] sm:$0xff]
    %v56 = vld [vmem:[#allocation6 + $0x38] sm:$0xff]
    %v57 = vld [vmem:[#allocation6 + $0x40] sm:$0xff]
    %v58 = vld [vmem:[#allocation6 + $0x48] sm:$0xff]
    %v59 = vld [vmem:[#allocation6 + $0x50] sm:$0xff]
    %v60 = vld [vmem:[#allocation6 + $0x58] sm:$0xff]
    %v61 = vld [vmem:[#allocation6 + $0x60] sm:$0xff]
    %v62 = vld [vmem:[#allocation6 + $0x68] sm:$0xff]
    %v63 = vld [vmem:[#allocation6 + $0x70] sm:$0xff]
    %v64 = vld [vmem:[#allocation6 + $0x78] sm:$0xff]
    %v65 = vld [vmem:[%s3] sm:$0x1]
    %v67 = vlaneseq
    %v68 = vshrl.u32 %v67, 7
    %v69 = vsub.s32 0, %v68
    %v70 = vrot.slane %v65, %v69
    %72 = vmatprep.subr.mxu0 0.0
    %73 = vmatpush1.xpose.msra.mxu0 %v49
    %74 = vmatprep.subr.mxu0 0.0
    %75 = vmatpush1.xpose.msra.mxu0 %v50
    %76 = vmatprep.subr.mxu0 0.0
    %77 = vmatpush1.xpose.msra.mxu0 %v51
    %78 = vmatprep.subr.mxu0 0.0
    %79 = vmatpush1.xpose.msra.mxu0 %v52
    %80 = vmatprep.subr.mxu0 0.0
    %81 = vmatpush1.xpose.msra.mxu0 %v53
    %82 = vmatprep.subr.mxu0 0.0
    %83 = vmatpush1.xpose.msra.mxu0 %v54
    %84 = vmatprep.subr.mxu0 0.0
    %85 = vmatpush1.xpose.msra.mxu0 %v55
    %86 = vmatprep.subr.mxu0 0.0
    %87 = vmatpush1.xpose.msra.mxu0 %v56
    %88 = vmatprep.subr.mxu0 0.0
    %89 = vmatpush1.xpose.msra.mxu0 %v57
    %90 = vmatprep.subr.mxu0 0.0
    %91 = vmatpush1.xpose.msra.mxu0 %v58
    %92 = vmatprep.subr.mxu0 0.0
    %93 = vmatpush1.xpose.msra.mxu0 %v59
    %94 = vmatprep.subr.mxu0 0.0
    %95 = vmatpush1.xpose.msra.mxu0 %v60
    %96 = vmatprep.subr.mxu0 0.0
    %97 = vmatpush1.xpose.msra.mxu0 %v61
    %98 = vmatprep.subr.mxu0 0.0
    %99 = vmatpush1.xpose.msra.mxu0 %v62
    %100 = vmatprep.subr.mxu0 0.0
    %101 = vmatpush1.xpose.msra.mxu0 %v63
    %102 = vmatprep.subr.mxu0 0.0
    %103 = vmatpush1.xpose.msra.mxu0 %v64
    %104 = vmatprep.subr.mxu0 0.0
    %105 = vmatpush1.xpose.msra.mxu0 0.0
    %106 = vmatprep.subr.mxu0 0.0
    %107 = vmatpush1.xpose.msra.mxu0 0.0
    %108 = vmatprep.subr.mxu0 0.0
    %109 = vmatpush1.xpose.msra.mxu0 0.0
    %110 = vmatprep.subr.mxu0 0.0
    %111 = vmatpush1.xpose.msra.mxu0 0.0
    %112 = vmatprep.subr.mxu0 0.0
    %113 = vmatpush1.xpose.msra.mxu0 0.0
    %114 = vmatprep.subr.mxu0 0.0
    %115 = vmatpush1.xpose.msra.mxu0 0.0
    %116 = vmatprep.subr.mxu0 0.0
    %117 = vmatpush1.xpose.msra.mxu0 0.0
    %118 = vmatprep.subr.mxu0 0.0
    %119 = vmatpush1.xpose.msra.mxu0 0.0
    %120 = vmatprep.subr.mxu0 0.0
    %121 = vmatpush1.xpose.msra.mxu0 0.0
    %122 = vmatprep.subr.mxu0 0.0
    %123 = vmatpush1.xpose.msra.mxu0 0.0
    %124 = vmatprep.subr.mxu0 0.0
    %125 = vmatpush1.xpose.msra.mxu0 0.0
    %126 = vmatprep.subr.mxu0 0.0
    %127 = vmatpush1.xpose.msra.mxu0 0.0
    %128 = vmatprep.subr.mxu0 0.0
    %129 = vmatpush1.xpose.msra.mxu0 0.0
    %130 = vmatprep.subr.mxu0 0.0
    %131 = vmatpush1.xpose.msra.mxu0 0.0
    %132 = vmatprep.subr.mxu0 0.0
    %133 = vmatpush1.xpose.msra.mxu0 0.0
    %134 = vmatprep.subr.mxu0 0.0
    %135 = vmatpush1.xpose.msra.mxu0 0.0
    %136 = vmatprep.mubr.f32.mxu0 0.0
    %137 = vmatmul.mubr.f32.gmra.mrb[0].mxu0 %v47
    %v138 = vpop.f32.mrb[0].mxu0
    %v139 = vadd.f32 %v70, %v138
    %v140 = vpop.f32.mrb[0].mxu0
    %141 = vmatprep.mubr.f32.mxu0 0.0
    %142 = vmatmul.mubr.f32.gmra.mrb[0].mxu0 %v48
    %v143 = vpop.f32.mrb[0].mxu0
    %v144 = vadd.f32 %v70, %v143
    %v145 = vpop.f32.mrb[0].mxu0
    %146 = vdwg.mxu0
    %v147 = vmax.f32 %v139, 0.0
    %v148 = vmax.f32 %v144, 0.0
    %149 = vmatprep.subr.mxu0 0.0
    %150 = vmatpush1.xpose.msra.mxu0 %v49
    %151 = vmatprep.subr.mxu0 0.0
    %152 = vmatpush1.xpose.msra.mxu0 %v50
    %153 = vmatprep.subr.mxu0 0.0
    %154 = vmatpush1.xpose.msra.mxu0 %v51
    %155 = vmatprep.subr.mxu0 0.0
    %156 = vmatpush1.xpose.msra.mxu0 %v52
    %157 = vmatprep.subr.mxu0 0.0
    %158 = vmatpush1.xpose.msra.mxu0 %v53
    %159 = vmatprep.subr.mxu0 0.0
    %160 = vmatpush1.xpose.msra.mxu0 %v54
    %161 = vmatprep.subr.mxu0 0.0
    %162 = vmatpush1.xpose.msra.mxu0 %v55
    %163 = vmatprep.subr.mxu0 0.0
    %164 = vmatpush1.xpose.msra.mxu0 %v56
    %165 = vmatprep.subr.mxu0 0.0
    %166 = vmatpush1.xpose.msra.mxu0 %v57
    %167 = vmatprep.subr.mxu0 0.0
    %168 = vmatpush1.xpose.msra.mxu0 %v58
    %169 = vmatprep.subr.mxu0 0.0
    %170 = vmatpush1.xpose.msra.mxu0 %v59
    %171 = vmatprep.subr.mxu0 0.0
    %172 = vmatpush1.xpose.msra.mxu0 %v60
    %173 = vmatprep.subr.mxu0 0.0
    %174 = vmatpush1.xpose.msra.mxu0 %v61
    %175 = vmatprep.subr.mxu0 0.0
    %176 = vmatpush1.xpose.msra.mxu0 %v62
    %177 = vmatprep.subr.mxu0 0.0
    %178 = vmatpush1.xpose.msra.mxu0 %v63
    %179 = vmatprep.subr.mxu0 0.0
    %180 = vmatpush1.xpose.msra.mxu0 %v64
    %181 = vmatprep.subr.mxu0 0.0
    %182 = vmatpush1.xpose.msra.mxu0 0.0
    %183 = vmatprep.subr.mxu0 0.0
    %184 = vmatpush1.xpose.msra.mxu0 0.0
    %185 = vmatprep.subr.mxu0 0.0
    %186 = vmatpush1.xpose.msra.mxu0 0.0
    %187 = vmatprep.subr.mxu0 0.0
    %188 = vmatpush1.xpose.msra.mxu0 0.0
    %189 = vmatprep.subr.mxu0 0.0
    %190 = vmatpush1.xpose.msra.mxu0 0.0
    %191 = vmatprep.subr.mxu0 0.0
    %192 = vmatpush1.xpose.msra.mxu0 0.0
    %193 = vmatprep.subr.mxu0 0.0
    %194 = vmatpush1.xpose.msra.mxu0 0.0
    %195 = vmatprep.subr.mxu0 0.0
    %196 = vmatpush1.xpose.msra.mxu0 0.0
    %197 = vmatprep.subr.mxu0 0.0
    %198 = vmatpush1.xpose.msra.mxu0 0.0
    %199 = vmatprep.subr.mxu0 0.0
    %200 = vmatpush1.xpose.msra.mxu0 0.0
    %201 = vmatprep.subr.mxu0 0.0
    %202 = vmatpush1.xpose.msra.mxu0 0.0
    %203 = vmatprep.subr.mxu0 0.0
    %204 = vmatpush1.xpose.msra.mxu0 0.0
    %205 = vmatprep.subr.mxu0 0.0
    %206 = vmatpush1.xpose.msra.mxu0 0.0
    %207 = vmatprep.subr.mxu0 0.0
    %208 = vmatpush1.xpose.msra.mxu0 0.0
    %209 = vmatprep.subr.mxu0 0.0
    %210 = vmatpush1.xpose.msra.mxu0 0.0
    %211 = vmatprep.subr.mxu0 0.0
    %212 = vmatpush1.xpose.msra.mxu0 0.0
    %213 = vmatprep.mubr.f32.mxu0 0.0
    %214 = vmatmul.mubr.f32.gmra.mrb[0].mxu0 %v147
    %v215 = vpop.f32.mrb[0].mxu0
    %v216 = vadd.f32 %v70, %v215
    %v217 = vpop.f32.mrb[0].mxu0
    %218 = vmatprep.mubr.f32.mxu0 0.0
    %219 = vmatmul.mubr.f32.gmra.mrb[0].mxu0 %v148
    %v220 = vpop.f32.mrb[0].mxu0
    %v221 = vadd.f32 %v70, %v220
    %v222 = vpop.f32.mrb[0].mxu0
    %223 = vdwg.mxu0
    %224 = vst [vmem:[#allocation8] sm:$0xff] %v216
    %225 = vst [vmem:[#allocation8 + $0x8] sm:$0xff] %v221
    // Predicated region
    $region26: #{tpu_custom_call.1} parent=1 // pred_check
      _
    $region27: #{tpu_custom_call.1} parent=1 // pred_check_branch
      %227 = sbr.rel (0) target = $region29
    $region28: #{tpu_custom_call.1} parent=1 // pred_region
      %s229 = ssub.s32 256, 256
      %230 = vsyncadd [#allocation5], %s229
      %s231 = sshll.u32 [#allocation8], 4
      %s232 = int_to_ptr.vmem [resolvable:$true] %s231
      %237 = dma.vmem_to_hbm [thread:$0]  %s232, 256, %s4, [#allocation5], 128, 128, 8
    $region29: #{tpu_custom_call.1} parent=1 // pred_fallthru
      _
    // Predicated region
    $region30: #{tpu_custom_call.1} parent=1 // pred_check
      _
    $region31: #{tpu_custom_call.1} parent=1 // pred_check_branch
      %239 = sbr.rel (0) target = $region33
    $region32: #{tpu_custom_call.1} parent=1 // pred_region
      %240 = dma.done [#allocation5], 256
    $region33: #{tpu_custom_call.1} parent=1 // pred_fallthru
      _
    %241 = vsyncpa [#allocation4], 1
    %242 = vsyncpa [#allocation7], 1
    %243 = vsyncpa [#allocation5], 1

</llo_original>
